<compile_context>
chip_gen: v7x
topology: tpu7x:2x2x1
jax: 0.10.0
libtpu: 0.0.40
codegen_flags: <defaults>
</compile_context>

<pallas_src>
import functools

import jax
import jax.numpy as jnp
from jax import lax
from jax.experimental import pallas as pl
from jax.experimental.pallas import tpu as pltpu


LATENT_DIM = 5
HASH_DIM = 30
L_PAD = 8      # latent_dim padded to a sublane multiple of 8
H_PAD = 32     # hash_dim padded to a sublane multiple of 8

_TILE_N_CAP = 16384          # good for v5e/v6e/v7x; ~12-14 MiB peak working set
_VMEM_LIMIT = 32 * 1024 * 1024

_SQRT_HALF = 0.7071067811865476
_GELU_C = 0.7978845608028654  # sqrt(2/pi)


def _gelu_erf(x):
    # Exact erf formulation -- matches PyTorch nn.GELU() default.  Lowers to a
    # VPU polynomial; keep only if exact parity is required (review item 2).
    return 0.5 * x * (1.0 + lax.erf(x * jnp.float32(_SQRT_HALF)))


def _gelu_tanh(x):
    # tanh approximation: tanh runs on the EUP (separate VLIW slot), cutting the
    # VALU work per element ~2.5x.  Differs from exact-erf GELU by O(1e-3).
    return 0.5 * x * (1.0 + jnp.tanh(jnp.float32(_GELU_C) * (x + 0.044715 * x * x * x)))


def hashing_kernel(x_ref, w1_ref, b1_ref, wh_ref, bh_ref, o_ref, *, gelu):
    # x_ref : [L_PAD, TILE_N]   features on sublanes, batch lane-dense
    # w1_ref: [H_PAD, L_PAD]    b1_ref: [H_PAD, 1]
    # wh_ref: [4, H_PAD, H_PAD] bh_ref: [4, H_PAD, 1]   (layers 2..5 packed)
    # o_ref : [H_PAD, TILE_N]
    #
    # NOTE: default dot precision is used (same lowering as the jnp reference).
    # If bit-for-bit parity with PyTorch f32 Linear is required, pin
    # precision=lax.Precision.HIGHEST on these dots -- MXU is not the binding
    # slot here, so the extra passes are cheap.
    h = jnp.dot(w1_ref[...], x_ref[...],
                preferred_element_type=jnp.float32) + b1_ref[...]
    h = gelu(h)

    for k in range(3):
        h = jnp.dot(wh_ref[k], h,
                    preferred_element_type=jnp.float32) + bh_ref[k]
        h = gelu(h)

    h = jnp.dot(wh_ref[3], h, preferred_element_type=jnp.float32) + bh_ref[3]
    o_ref[...] = jnp.tanh(h).astype(o_ref.dtype)


def _round_up(x, m):
    return (x + m - 1) // m * m


def _pick_tile_n(n):
    """Pick a lane-tile: >=2 grid steps when possible (v7x megacore), <= cap."""
    n128 = _round_up(max(n, 1), 128)
    if n128 <= 128:
        return 128
    half = _round_up((n128 + 1) // 2, 128)
    return min(_TILE_N_CAP, half)


def pack_params(params):
    """Pad + pack PyTorch-style params (W[out,in], b[out]) once (< 20 KiB)."""
    (w1, b1), *hidden = params
    assert len(hidden) == 4
    w1_p = jnp.zeros((H_PAD, L_PAD), jnp.float32).at[:HASH_DIM, :LATENT_DIM].set(w1)
    b1_p = jnp.zeros((H_PAD, 1), jnp.float32).at[:HASH_DIM, 0].set(b1)
    wh_p = jnp.zeros((4, H_PAD, H_PAD), jnp.float32)
    bh_p = jnp.zeros((4, H_PAD, 1), jnp.float32)
    for k, (w, b) in enumerate(hidden):
        wh_p = wh_p.at[k, :HASH_DIM, :HASH_DIM].set(w)
        bh_p = bh_p.at[k, :HASH_DIM, 0].set(b)
    return w1_p, b1_p, wh_p, bh_p


def hashing_forward_t(x_t, packed, *, tile_n=None, approx_gelu=False):
    """Fast path (no wrapper-side repack passes).

    x_t    : [L_PAD, N] f32, rows >= LATENT_DIM zero, batch lane-dense.
    packed : output of pack_params(params).
    returns: [H_PAD, N] f32; rows >= HASH_DIM are exact zeros.  N need not be a
             multiple of the tile (ragged last block is masked).
    """
    w1_p, b1_p, wh_p, bh_p = packed
    l_pad, n = x_t.shape
    assert l_pad == L_PAD
    x_t = x_t.astype(jnp.float32)

    if tile_n is None:
        tile_n = _pick_tile_n(n)
    tile_n = max(128, _round_up(tile_n, 128))
    grid = (pl.cdiv(n, tile_n),)

    gelu = _gelu_tanh if approx_gelu else _gelu_erf
    kernel = functools.partial(hashing_kernel, gelu=gelu)

    weight_elems = H_PAD * L_PAD + 4 * H_PAD * H_PAD + H_PAD + 4 * H_PAD
    cost = pl.CostEstimate(
        flops=2 * n * (L_PAD * H_PAD + 4 * H_PAD * H_PAD),
        transcendentals=5 * n * H_PAD,            # 4x GELU + 1x tanh per column
        bytes_accessed=4 * (L_PAD * n + H_PAD * n + weight_elems),
    )

    return pl.pallas_call(
        kernel,
        out_shape=jax.ShapeDtypeStruct((H_PAD, n), jnp.float32),
        grid=grid,
        in_specs=[
            pl.BlockSpec((L_PAD, tile_n), lambda i: (0, i)),       # x^T, tiled on N
            pl.BlockSpec((H_PAD, L_PAD), lambda i: (0, 0)),        # W1 (resident)
            pl.BlockSpec((H_PAD, 1), lambda i: (0, 0)),            # b1 (resident)
            pl.BlockSpec((4, H_PAD, H_PAD), lambda i: (0, 0, 0)),  # W2..W5 packed
            pl.BlockSpec((4, H_PAD, 1), lambda i: (0, 0, 0)),      # b2..b5 packed
        ],
        out_specs=pl.BlockSpec((H_PAD, tile_n), lambda i: (0, i)),
        compiler_params=pltpu.CompilerParams(
            dimension_semantics=("parallel",),    # megacore sharding on v7x
            vmem_limit_bytes=_VMEM_LIMIT,         # headroom for v5e's 16 MiB default
        ),
        cost_estimate=cost,
    )(x_t, w1_p, b1_p, wh_p, bh_p)


def hashing_forward(x, params, *, tile_n=None, approx_gelu=False):
    """PyTorch-layout compatibility wrapper: x [N, latent_dim] -> [N, hash_dim].

    Pays for one small input repack and one output transpose pass; callers that
    can consume the lane-dense [hash, N] layout should use hashing_forward_t.
    """
    n, latent = x.shape
    assert latent == LATENT_DIM
    n_pad = _round_up(max(n, 1), 128)
    x_t = jnp.zeros((L_PAD, n_pad), jnp.float32).at[:LATENT_DIM, :n].set(x.T)
    out_t = hashing_forward_t(x_t, pack_params(params),
                              tile_n=tile_n, approx_gelu=approx_gelu)
    return out_t[:HASH_DIM, :n].T


def init_params(key, latent_dim=LATENT_DIM, hash_dim=HASH_DIM):
    """Deterministic init mirroring PyTorch nn.Linear default (W: [out, in])."""
    dims = [(hash_dim, latent_dim)] + [(hash_dim, hash_dim)] * 4
    params = []
    for (fan_out, fan_in) in dims:
        key, kw, kb = jax.random.split(key, 3)
        bound = 1.0 / jnp.sqrt(float(fan_in))
        w = jax.random.uniform(kw, (fan_out, fan_in), jnp.float32, -bound, bound)
        b = jax.random.uniform(kb, (fan_out,), jnp.float32, -bound, bound)
        params.append((w, b))
    return params


def reference_forward(x, params, gelu=_gelu_erf):
    h = x
    for i, (w, b) in enumerate(params):
        h = h @ w.T + b
        if i < len(params) - 1:
            h = gelu(h)
    return jnp.tanh(h)


if __name__ == "__main__":
    key = jax.random.PRNGKey(0)
    kp, kx1, kx2 = jax.random.split(key, 3)
    params = init_params(kp)
    packed = pack_params(params)

    # 1) Small batch, exact-erf GELU, PyTorch-layout compatibility wrapper.
    n1 = 8
    x1 = jax.random.normal(kx1, (n1, LATENT_DIM), jnp.float32)
    out1 = jax.block_until_ready(hashing_forward(x1, params))
    ref1 = reference_forward(x1, params)
    assert out1.shape == (n1, HASH_DIM)
    assert jnp.allclose(out1, ref1, atol=2e-4, rtol=2e-4)

    # 2) Ragged batch, multi-step grid, lane-dense fast path (no wrapper repack).
    n2 = 300
    x2 = jax.random.normal(kx2, (n2, LATENT_DIM), jnp.float32)
    x2_t = jnp.pad(x2, ((0, 0), (0, L_PAD - LATENT_DIM))).T          # [L_PAD, n2]
    out2_t = jax.block_until_ready(hashing_forward_t(x2_t, packed, tile_n=128))
    ref2 = reference_forward(x2, params)
    assert out2_t.shape == (H_PAD, n2)
    assert jnp.allclose(out2_t[:HASH_DIM].T, ref2, atol=2e-4, rtol=2e-4)
    assert jnp.allclose(out2_t[HASH_DIM:], 0.0, atol=1e-6)  # padded rows exact zero

    # 3) tanh-approx GELU perf option, checked against a matching reference.
    out3 = jax.block_until_ready(hashing_forward(x2, params, approx_gelu=True))
    ref3 = reference_forward(x2, params, gelu=_gelu_tanh)
    assert out3.shape == (n2, HASH_DIM)
    assert jnp.allclose(out3, ref3, atol=2e-4, rtol=2e-4)

    print("KERNEL_OK")
</pallas_src>

<mosaic_0001>
module attributes {stable_mosaic.version = 11 : i64} {
  func.func @hashing_kernel(%arg0: i32, %arg1: memref<8x128xf32, #tpu.memory_space<vmem>>, %arg2: memref<32x8xf32, #tpu.memory_space<vmem>>, %arg3: memref<32x1xf32, #tpu.memory_space<vmem>>, %arg4: memref<4x32x32xf32, #tpu.memory_space<vmem>>, %arg5: memref<4x32x1xf32, #tpu.memory_space<vmem>>, %arg6: memref<32x128xf32, #tpu.memory_space<vmem>>) attributes {dimension_semantics = [#tpu.dimension_semantics<parallel>], iteration_bounds = array<i64: 1>, scalar_prefetch = 0 : i64, scratch_operands = 0 : i64, tpu.core_type = #tpu.core_type<tc>, window_params = [{transform_indices = @transform_0, window_bounds = array<i64: 8, 128>}, {pipeline_mode = #tpu.pipeline_mode<synchronous>, transform_indices = @transform_1, window_bounds = array<i64: 32, 8>}, {pipeline_mode = #tpu.pipeline_mode<synchronous>, transform_indices = @transform_2, window_bounds = array<i64: 32, 1>}, {pipeline_mode = #tpu.pipeline_mode<synchronous>, transform_indices = @transform_3, window_bounds = array<i64: 4, 32, 32>}, {pipeline_mode = #tpu.pipeline_mode<synchronous>, transform_indices = @transform_4, window_bounds = array<i64: 4, 32, 1>}, {transform_indices = @transform_5, window_bounds = array<i64: 32, 128>}]} {
    %c0 = arith.constant 0 : index
    %c0_0 = arith.constant 0 : index
    %0 = vector.load %arg2[%c0, %c0_0] : memref<32x8xf32, #tpu.memory_space<vmem>>, vector<32x8xf32>
    %c0_1 = arith.constant 0 : index
    %c0_2 = arith.constant 0 : index
    %1 = vector.load %arg1[%c0_1, %c0_2] : memref<8x128xf32, #tpu.memory_space<vmem>>, vector<8x128xf32>
    %cst = arith.constant dense<0.000000e+00> : vector<32x128xf32>
    %2 = tpu.matmul %0, %1, %cst {dimension_numbers = #tpu.dot_dimension_numbers<[1], [0], [0], [1], [0, 0, 1, 1], [], []>} : vector<32x8xf32>, vector<8x128xf32>, vector<32x128xf32> -> vector<32x128xf32>
    %c0_3 = arith.constant 0 : index
    %c0_4 = arith.constant 0 : index
    %3 = vector.load %arg3[%c0_3, %c0_4] : memref<32x1xf32, #tpu.memory_space<vmem>>, vector<32x1xf32>
    %4 = vector.broadcast %3 : vector<32x1xf32> to vector<32x128xf32>
    %5 = arith.addf %2, %4 : vector<32x128xf32>
    %cst_5 = arith.constant 5.000000e-01 : f32
    %6 = vector.broadcast %cst_5 : f32 to vector<32x128xf32>
    %7 = arith.mulf %6, %5 : vector<32x128xf32>
    %cst_6 = arith.constant 0.707106769 : f32
    %8 = vector.broadcast %cst_6 : f32 to vector<32x128xf32>
    %9 = arith.mulf %5, %8 : vector<32x128xf32>
    %10 = math.erf %9 : vector<32x128xf32>
    %cst_7 = arith.constant 1.000000e+00 : f32
    %11 = vector.broadcast %cst_7 : f32 to vector<32x128xf32>
    %12 = arith.addf %11, %10 : vector<32x128xf32>
    %13 = arith.mulf %7, %12 : vector<32x128xf32>
    %c0_8 = arith.constant 0 : index
    %c0_9 = arith.constant 0 : index
    %c0_10 = arith.constant 0 : index
    %14 = vector.load %arg4[%c0_8, %c0_9, %c0_10] : memref<4x32x32xf32, #tpu.memory_space<vmem>>, vector<1x32x32xf32>
    %15 = vector.shape_cast %14 : vector<1x32x32xf32> to vector<32x32xf32>
    %cst_11 = arith.constant dense<0.000000e+00> : vector<32x128xf32>
    %16 = tpu.matmul %15, %13, %cst_11 {dimension_numbers = #tpu.dot_dimension_numbers<[1], [0], [0], [1], [0, 0, 1, 1], [], []>} : vector<32x32xf32>, vector<32x128xf32>, vector<32x128xf32> -> vector<32x128xf32>
    %c0_12 = arith.constant 0 : index
    %c0_13 = arith.constant 0 : index
    %c0_14 = arith.constant 0 : index
    %17 = vector.load %arg5[%c0_12, %c0_13, %c0_14] : memref<4x32x1xf32, #tpu.memory_space<vmem>>, vector<1x32x1xf32>
    %18 = vector.shape_cast %17 : vector<1x32x1xf32> to vector<32x1xf32>
    %19 = vector.broadcast %18 : vector<32x1xf32> to vector<32x128xf32>
    %20 = arith.addf %16, %19 : vector<32x128xf32>
    %cst_15 = arith.constant 5.000000e-01 : f32
    %21 = vector.broadcast %cst_15 : f32 to vector<32x128xf32>
    %22 = arith.mulf %21, %20 : vector<32x128xf32>
    %cst_16 = arith.constant 0.707106769 : f32
    %23 = vector.broadcast %cst_16 : f32 to vector<32x128xf32>
    %24 = arith.mulf %20, %23 : vector<32x128xf32>
    %25 = math.erf %24 : vector<32x128xf32>
    %cst_17 = arith.constant 1.000000e+00 : f32
    %26 = vector.broadcast %cst_17 : f32 to vector<32x128xf32>
    %27 = arith.addf %26, %25 : vector<32x128xf32>
    %28 = arith.mulf %22, %27 : vector<32x128xf32>
    %c1 = arith.constant 1 : index
    %c0_18 = arith.constant 0 : index
    %c0_19 = arith.constant 0 : index
    %29 = vector.load %arg4[%c1, %c0_18, %c0_19] : memref<4x32x32xf32, #tpu.memory_space<vmem>>, vector<1x32x32xf32>
    %30 = vector.shape_cast %29 : vector<1x32x32xf32> to vector<32x32xf32>
    %cst_20 = arith.constant dense<0.000000e+00> : vector<32x128xf32>
    %31 = tpu.matmul %30, %28, %cst_20 {dimension_numbers = #tpu.dot_dimension_numbers<[1], [0], [0], [1], [0, 0, 1, 1], [], []>} : vector<32x32xf32>, vector<32x128xf32>, vector<32x128xf32> -> vector<32x128xf32>
    %c1_21 = arith.constant 1 : index
    %c0_22 = arith.constant 0 : index
    %c0_23 = arith.constant 0 : index
    %32 = vector.load %arg5[%c1_21, %c0_22, %c0_23] : memref<4x32x1xf32, #tpu.memory_space<vmem>>, vector<1x32x1xf32>
    %33 = vector.shape_cast %32 : vector<1x32x1xf32> to vector<32x1xf32>
    %34 = vector.broadcast %33 : vector<32x1xf32> to vector<32x128xf32>
    %35 = arith.addf %31, %34 : vector<32x128xf32>
    %cst_24 = arith.constant 5.000000e-01 : f32
    %36 = vector.broadcast %cst_24 : f32 to vector<32x128xf32>
    %37 = arith.mulf %36, %35 : vector<32x128xf32>
    %cst_25 = arith.constant 0.707106769 : f32
    %38 = vector.broadcast %cst_25 : f32 to vector<32x128xf32>
    %39 = arith.mulf %35, %38 : vector<32x128xf32>
    %40 = math.erf %39 : vector<32x128xf32>
    %cst_26 = arith.constant 1.000000e+00 : f32
    %41 = vector.broadcast %cst_26 : f32 to vector<32x128xf32>
    %42 = arith.addf %41, %40 : vector<32x128xf32>
    %43 = arith.mulf %37, %42 : vector<32x128xf32>
    %c2 = arith.constant 2 : index
    %c0_27 = arith.constant 0 : index
    %c0_28 = arith.constant 0 : index
    %44 = vector.load %arg4[%c2, %c0_27, %c0_28] : memref<4x32x32xf32, #tpu.memory_space<vmem>>, vector<1x32x32xf32>
    %45 = vector.shape_cast %44 : vector<1x32x32xf32> to vector<32x32xf32>
    %cst_29 = arith.constant dense<0.000000e+00> : vector<32x128xf32>
    %46 = tpu.matmul %45, %43, %cst_29 {dimension_numbers = #tpu.dot_dimension_numbers<[1], [0], [0], [1], [0, 0, 1, 1], [], []>} : vector<32x32xf32>, vector<32x128xf32>, vector<32x128xf32> -> vector<32x128xf32>
    %c2_30 = arith.constant 2 : index
    %c0_31 = arith.constant 0 : index
    %c0_32 = arith.constant 0 : index
    %47 = vector.load %arg5[%c2_30, %c0_31, %c0_32] : memref<4x32x1xf32, #tpu.memory_space<vmem>>, vector<1x32x1xf32>
    %48 = vector.shape_cast %47 : vector<1x32x1xf32> to vector<32x1xf32>
    %49 = vector.broadcast %48 : vector<32x1xf32> to vector<32x128xf32>
    %50 = arith.addf %46, %49 : vector<32x128xf32>
    %cst_33 = arith.constant 5.000000e-01 : f32
    %51 = vector.broadcast %cst_33 : f32 to vector<32x128xf32>
    %52 = arith.mulf %51, %50 : vector<32x128xf32>
    %cst_34 = arith.constant 0.707106769 : f32
    %53 = vector.broadcast %cst_34 : f32 to vector<32x128xf32>
    %54 = arith.mulf %50, %53 : vector<32x128xf32>
    %55 = math.erf %54 : vector<32x128xf32>
    %cst_35 = arith.constant 1.000000e+00 : f32
    %56 = vector.broadcast %cst_35 : f32 to vector<32x128xf32>
    %57 = arith.addf %56, %55 : vector<32x128xf32>
    %58 = arith.mulf %52, %57 : vector<32x128xf32>
    %c3 = arith.constant 3 : index
    %c0_36 = arith.constant 0 : index
    %c0_37 = arith.constant 0 : index
    %59 = vector.load %arg4[%c3, %c0_36, %c0_37] : memref<4x32x32xf32, #tpu.memory_space<vmem>>, vector<1x32x32xf32>
    %60 = vector.shape_cast %59 : vector<1x32x32xf32> to vector<32x32xf32>
    %cst_38 = arith.constant dense<0.000000e+00> : vector<32x128xf32>
    %61 = tpu.matmul %60, %58, %cst_38 {dimension_numbers = #tpu.dot_dimension_numbers<[1], [0], [0], [1], [0, 0, 1, 1], [], []>} : vector<32x32xf32>, vector<32x128xf32>, vector<32x128xf32> -> vector<32x128xf32>
    %c3_39 = arith.constant 3 : index
    %c0_40 = arith.constant 0 : index
    %c0_41 = arith.constant 0 : index
    %62 = vector.load %arg5[%c3_39, %c0_40, %c0_41] : memref<4x32x1xf32, #tpu.memory_space<vmem>>, vector<1x32x1xf32>
    %63 = vector.shape_cast %62 : vector<1x32x1xf32> to vector<32x1xf32>
    %64 = vector.broadcast %63 : vector<32x1xf32> to vector<32x128xf32>
    %65 = arith.addf %61, %64 : vector<32x128xf32>
    %66 = math.tanh %65 : vector<32x128xf32>
    %c0_42 = arith.constant 0 : index
    %c0_43 = arith.constant 0 : index
    %67 = vector.load %arg6[%c0_42, %c0_43] : memref<32x128xf32, #tpu.memory_space<vmem>>, vector<32x128xf32>
    tpu.vector_store %arg6[%c0_42, %c0_43], %66 {strides = array<i32>} : memref<32x128xf32, #tpu.memory_space<vmem>>, vector<32x128xf32>,
    return
  }
  func.func @transform_0(%arg0: i32) -> (i32, i32) {
    %c0_i32 = arith.constant 0 : i32
    %c0_i32_0 = arith.constant 0 : i32
    return %c0_i32, %arg0 : i32, i32
  }
  func.func @transform_1(%arg0: i32) -> (i32, i32) {
    %c0_i32 = arith.constant 0 : i32
    %c0_i32_0 = arith.constant 0 : i32
    %c0_i32_1 = arith.constant 0 : i32
    return %c0_i32, %c0_i32_0 : i32, i32
  }
  func.func @transform_2(%arg0: i32) -> (i32, i32) {
    %c0_i32 = arith.constant 0 : i32
    %c0_i32_0 = arith.constant 0 : i32
    %c0_i32_1 = arith.constant 0 : i32
    return %c0_i32, %c0_i32_0 : i32, i32
  }
  func.func @transform_3(%arg0: i32) -> (i32, i32, i32) {
    %c0_i32 = arith.constant 0 : i32
    %c0_i32_0 = arith.constant 0 : i32
    %c0_i32_1 = arith.constant 0 : i32
    %c0_i32_2 = arith.constant 0 : i32
    return %c0_i32, %c0_i32_0, %c0_i32_1 : i32, i32, i32
  }
  func.func @transform_4(%arg0: i32) -> (i32, i32, i32) {
    %c0_i32 = arith.constant 0 : i32
    %c0_i32_0 = arith.constant 0 : i32
    %c0_i32_1 = arith.constant 0 : i32
    %c0_i32_2 = arith.constant 0 : i32
    return %c0_i32, %c0_i32_0, %c0_i32_1 : i32, i32, i32
  }
  func.func @transform_5(%arg0: i32) -> (i32, i32) {
    %c0_i32 = arith.constant 0 : i32
    %c0_i32_0 = arith.constant 0 : i32
    return %c0_i32, %arg0 : i32, i32
  }
}

</mosaic_0001>

<llo_original>
// kernel: tpu_custom_call.1
$region0: #{tpu_custom_call.1}
  #allocation0 [shape = 'u32[]', space=smem, size = 0x4, offset = 0x4, fixed_abs, tag = 'smem constant byte address 0x4 - core index']
  #allocation1 [shape = 'u32[144,128]{1,0:T(1,128)}', space=vmem, size = 0x12000, scoped, tag = 'internal scratch']
  %s0 = inlined_call_operand.vmem [shape: f32[8,128], index: 0, kind: input, shape index: {}]
  %s1 = inlined_call_operand.vmem [shape: f32[32,8], index: 1, kind: input, shape index: {}]
  %s2 = inlined_call_operand.vmem [shape: f32[32,1], index: 2, kind: input, shape index: {}]
  %s3 = inlined_call_operand.vmem [shape: f32[4,32,32], index: 3, kind: input, shape index: {}]
  %s4 = inlined_call_operand.vmem [shape: f32[4,32,1], index: 4, kind: input, shape index: {}]
  %s5 = inlined_call_operand.hbm [shape: f32[32,128], index: 5, kind: output, shape index: {}]
  %s6 = sld [smem:[#allocation0]]
  $region30: #{tpu_custom_call.1} parent=0
    _
  %s8 = ssub.s32 1, %s6
  %s9 = scalar_select 0, %s8, %s6
  $region1: #{tpu_custom_call.1} parent=0
    #allocation2 [shape = 'u8[16384]{0}', space=vmem, size = 0x4000, scoped, tag = 'output window, operand 0, single buffered']
    #allocation3 [shape = 's32[1]{0}', space=sflag, size = 0x4, scoped, tag = 'scoped memory for tpu_custom_call.1']
    %10 = vsyncpa [#allocation3], 0
    // Predicated region
    $region2: #{tpu_custom_call.1} parent=1 // pred_check
      _
    $region3: #{tpu_custom_call.1} parent=1 // pred_check_branch
      %12 = sbr.rel (0) target = $region5
    $region4: #{tpu_custom_call.1} parent=1 // pred_region
      _
    $region5: #{tpu_custom_call.1} parent=1 // pred_fallthru
      _
    // Predicated region
    $region6: #{tpu_custom_call.1} parent=1 // pred_check
      _
    $region7: #{tpu_custom_call.1} parent=1 // pred_check_branch
      %14 = sbr.rel (0) target = $region9
    $region8: #{tpu_custom_call.1} parent=1 // pred_region
      _
    $region9: #{tpu_custom_call.1} parent=1 // pred_fallthru
      _
    // Predicated region
    $region10: #{tpu_custom_call.1} parent=1 // pred_check
      _
    $region11: #{tpu_custom_call.1} parent=1 // pred_check_branch
      %16 = sbr.rel (0) target = $region13
    $region12: #{tpu_custom_call.1} parent=1 // pred_region
      _
    $region13: #{tpu_custom_call.1} parent=1 // pred_fallthru
      _
    // Predicated region
    $region14: #{tpu_custom_call.1} parent=1 // pred_check
      _
    $region15: #{tpu_custom_call.1} parent=1 // pred_check_branch
      %18 = sbr.rel (0) target = $region17
    $region16: #{tpu_custom_call.1} parent=1 // pred_region
      _
    $region17: #{tpu_custom_call.1} parent=1 // pred_fallthru
      _
    // Predicated region
    $region18: #{tpu_custom_call.1} parent=1 // pred_check
      _
    $region19: #{tpu_custom_call.1} parent=1 // pred_check_branch
      %20 = sbr.rel (0) target = $region21
    $region20: #{tpu_custom_call.1} parent=1 // pred_region
      _
    $region21: #{tpu_custom_call.1} parent=1 // pred_fallthru
      _
    %v21 = vld [vmem:[%s1] sm:$0xff]
    %v22 = vld [vmem:[%s1 + $0x8] sm:$0xff]
    %v23 = vld [vmem:[%s1 + $0x10] sm:$0xff]
    %v24 = vld [vmem:[%s1 + $0x18] sm:$0xff]
    %v25 = vld [vmem:[%s0] sm:$0xff]
    %v26 = vld [vmem:[%s2] sm:$0xff]
    %v27 = vld [vmem:[%s2 + $0x8] sm:$0xff]
    %v28 = vld [vmem:[%s2 + $0x10] sm:$0xff]
    %v29 = vld [vmem:[%s2 + $0x18] sm:$0xff]
    %31 = vset.pattern.permute.xlu0 0
    %32 = vperm.xlu0 %31, %v26
    %v33 = vpop.permute.xlu0 %32
    %36 = vset.pattern.permute.xlu0 0
    %37 = vperm.xlu0 %36, %v27
    %v38 = vpop.permute.xlu0 %37
    %41 = vset.pattern.permute.xlu0 0
    %42 = vperm.xlu0 %41, %v28
    %v43 = vpop.permute.xlu0 %42
    %46 = vset.pattern.permute.xlu0 0
    %47 = vperm.xlu0 %46, %v29
    %v48 = vpop.permute.xlu0 %47
    %vm50 = vcmask 64512
    %v52 = vsel %vm50, %v21, 0
    %v55 = vsel %vm50, %v22, 0
    %v58 = vsel %vm50, %v23, 0
    %v61 = vsel %vm50, %v24, 0
    %63 = vmatprep.subr.mxu0 0.0
    %64 = vmatpush1.msra.mxu0 %v25
    %65 = vmatprep.subr.mxu0 0.0
    %66 = vmatpush1.msra.mxu0 0.0
    %67 = vmatprep.subr.mxu0 0.0
    %68 = vmatpush1.msra.mxu0 0.0
    %69 = vmatprep.subr.mxu0 0.0
    %70 = vmatpush1.msra.mxu0 0.0
    %71 = vmatprep.subr.mxu0 0.0
    %72 = vmatpush1.msra.mxu0 0.0
    %73 = vmatprep.subr.mxu0 0.0
    %74 = vmatpush1.msra.mxu0 0.0
    %75 = vmatprep.subr.mxu0 0.0
    %76 = vmatpush1.msra.mxu0 0.0
    %77 = vmatprep.subr.mxu0 0.0
    %78 = vmatpush1.msra.mxu0 0.0
    %79 = vmatprep.subr.mxu0 0.0
    %80 = vmatpush1.msra.mxu0 0.0
    %81 = vmatprep.subr.mxu0 0.0
    %82 = vmatpush1.msra.mxu0 0.0
    %83 = vmatprep.subr.mxu0 0.0
    %84 = vmatpush1.msra.mxu0 0.0
    %85 = vmatprep.subr.mxu0 0.0
    %86 = vmatpush1.msra.mxu0 0.0
    %87 = vmatprep.subr.mxu0 0.0
    %88 = vmatpush1.msra.mxu0 0.0
    %89 = vmatprep.subr.mxu0 0.0
    %90 = vmatpush1.msra.mxu0 0.0
    %91 = vmatprep.subr.mxu0 0.0
    %92 = vmatpush1.msra.mxu0 0.0
    %93 = vmatprep.subr.mxu0 0.0
    %94 = vmatpush1.msra.mxu0 0.0
    %95 = vmatprep.subr.mxu0 0.0
    %96 = vmatpush1.msra.mxu0 0.0
    %97 = vmatprep.subr.mxu0 0.0
    %98 = vmatpush1.msra.mxu0 0.0
    %99 = vmatprep.subr.mxu0 0.0
    %100 = vmatpush1.msra.mxu0 0.0
    %101 = vmatprep.subr.mxu0 0.0
    %102 = vmatpush1.msra.mxu0 0.0
    %103 = vmatprep.subr.mxu0 0.0
    %104 = vmatpush1.msra.mxu0 0.0
    %105 = vmatprep.subr.mxu0 0.0
    %106 = vmatpush1.msra.mxu0 0.0
    %107 = vmatprep.subr.mxu0 0.0
    %108 = vmatpush1.msra.mxu0 0.0
    %109 = vmatprep.subr.mxu0 0.0
    %110 = vmatpush1.msra.mxu0 0.0
    %111 = vmatprep.subr.mxu0 0.0
    %112 = vmatpush1.msra.mxu0 0.0
    %113 = vmatprep.subr.mxu0 0.0
    %114 = vmatpush1.msra.mxu0 0.0
    %115 = vmatprep.subr.mxu0 0.0
    %116 = vmatpush1.msra.mxu0 0.0
    %117 = vmatprep.subr.mxu0 0.0
    %118 = vmatpush1.msra.mxu0 0.0
    %119 = vmatprep.subr.mxu0 0.0
    %120 = vmatpush1.msra.mxu0 0.0
    %121 = vmatprep.subr.mxu0 0.0
    %122 = vmatpush1.msra.mxu0 0.0
    %123 = vmatprep.subr.mxu0 0.0
    %124 = vmatpush1.msra.mxu0 0.0
    %125 = vmatprep.subr.mxu0 0.0
    %126 = vmatpush1.msra.mxu0 0.0
    %127 = vmatprep.mubr.f32.mxu0 0.0
    %128 = vmatmul.mubr.f32.gmra.mrb[0].mxu0 %v52
    %v129 = vpop.f32.mrb[0].mxu0
    %v130 = vadd.f32 %v33, %v129
    %v131 = vpop.f32.mrb[0].mxu0
    %132 = vmatprep.mubr.f32.mxu0 0.0
    %133 = vmatmul.mubr.f32.gmra.mrb[0].mxu0 %v55
    %v134 = vpop.f32.mrb[0].mxu0
    %v135 = vadd.f32 %v38, %v134
    %v136 = vpop.f32.mrb[0].mxu0
    %137 = vmatprep.mubr.f32.mxu0 0.0
    %138 = vmatmul.mubr.f32.gmra.mrb[0].mxu0 %v58
    %v139 = vpop.f32.mrb[0].mxu0
    %v140 = vadd.f32 %v43, %v139
    %v141 = vpop.f32.mrb[0].mxu0
    %142 = vmatprep.mubr.f32.mxu0 0.0
    %143 = vmatmul.mubr.f32.gmra.mrb[0].mxu0 %v61
    %v144 = vpop.f32.mrb[0].mxu0
    %v145 = vadd.f32 %v48, %v144
    %v146 = vpop.f32.mrb[0].mxu0
    %147 = vdwg.mxu0
    %v148 = vmul.f32 %v130, 0.5
    %v149 = vmul.f32 %v135, 0.5
    %v150 = vmul.f32 %v140, 0.5
    %v151 = vmul.f32 %v145, 0.5
    %v152 = vmul.f32 %v130, 0.70710677
    %v153 = vmul.f32 %v135, 0.70710677
    %v154 = vmul.f32 %v140, 0.70710677
    %v155 = vmul.f32 %v145, 0.70710677
    %v156 = verf.f32.pop %v152
    %v157 = verf.f32.pop %v153
    %v158 = verf.f32.pop %v154
    %v159 = verf.f32.pop %v155
    %v160 = vadd.f32 %v156, 1.0
    %v161 = vadd.f32 %v157, 1.0
    %v162 = vadd.f32 %v158, 1.0
    %v163 = vadd.f32 %v159, 1.0
    %v164 = vmul.f32 %v148, %v160
    %v165 = vmul.f32 %v149, %v161
    %v166 = vmul.f32 %v150, %v162
    %v167 = vmul.f32 %v151, %v163
    %v168 = vld [vmem:[%s3] sm:$0xff]
    %v169 = vld [vmem:[%s3 + $0x8] sm:$0xff]
    %v170 = vld [vmem:[%s3 + $0x10] sm:$0xff]
    %v171 = vld [vmem:[%s3 + $0x18] sm:$0xff]
    %v172 = vld [vmem:[%s4] sm:$0xff]
    %v173 = vld [vmem:[%s4 + $0x8] sm:$0xff]
    %v174 = vld [vmem:[%s4 + $0x10] sm:$0xff]
    %v175 = vld [vmem:[%s4 + $0x18] sm:$0xff]
    %177 = vset.pattern.permute.xlu0 0
    %178 = vperm.xlu0 %177, %v172
    %v179 = vpop.permute.xlu0 %178
    %182 = vset.pattern.permute.xlu0 0
    %183 = vperm.xlu0 %182, %v173
    %v184 = vpop.permute.xlu0 %183
    %187 = vset.pattern.permute.xlu0 0
    %188 = vperm.xlu0 %187, %v174
    %v189 = vpop.permute.xlu0 %188
    %192 = vset.pattern.permute.xlu0 0
    %193 = vperm.xlu0 %192, %v175
    %v194 = vpop.permute.xlu0 %193
    %vm196 = vcmask 261120
    %v198 = vsel %vm196, %v168, 0
    %v201 = vsel %vm196, %v169, 0
    %v204 = vsel %vm196, %v170, 0
    %v207 = vsel %vm196, %v171, 0
    %209 = vmatprep.subr.mxu0 0.0
    %210 = vmatpush1.msra.mxu0 %v164
    %211 = vmatprep.subr.mxu0 0.0
    %212 = vmatpush1.msra.mxu0 %v165
    %213 = vmatprep.subr.mxu0 0.0
    %214 = vmatpush1.msra.mxu0 %v166
    %215 = vmatprep.subr.mxu0 0.0
    %216 = vmatpush1.msra.mxu0 %v167
    %217 = vmatprep.subr.mxu0 0.0
    %218 = vmatpush1.msra.mxu0 0.0
    %219 = vmatprep.subr.mxu0 0.0
    %220 = vmatpush1.msra.mxu0 0.0
    %221 = vmatprep.subr.mxu0 0.0
    %222 = vmatpush1.msra.mxu0 0.0
    %223 = vmatprep.subr.mxu0 0.0
    %224 = vmatpush1.msra.mxu0 0.0
    %225 = vmatprep.subr.mxu0 0.0
    %226 = vmatpush1.msra.mxu0 0.0
    %227 = vmatprep.subr.mxu0 0.0
    %228 = vmatpush1.msra.mxu0 0.0
    %229 = vmatprep.subr.mxu0 0.0
    %230 = vmatpush1.msra.mxu0 0.0
    %231 = vmatprep.subr.mxu0 0.0
    %232 = vmatpush1.msra.mxu0 0.0
    %233 = vmatprep.subr.mxu0 0.0
    %234 = vmatpush1.msra.mxu0 0.0
    %235 = vmatprep.subr.mxu0 0.0
    %236 = vmatpush1.msra.mxu0 0.0
    %237 = vmatprep.subr.mxu0 0.0
    %238 = vmatpush1.msra.mxu0 0.0
    %239 = vmatprep.subr.mxu0 0.0
    %240 = vmatpush1.msra.mxu0 0.0
    %241 = vmatprep.subr.mxu0 0.0
    %242 = vmatpush1.msra.mxu0 0.0
    %243 = vmatprep.subr.mxu0 0.0
    %244 = vmatpush1.msra.mxu0 0.0
    %245 = vmatprep.subr.mxu0 0.0
    %246 = vmatpush1.msra.mxu0 0.0
    %247 = vmatprep.subr.mxu0 0.0
    %248 = vmatpush1.msra.mxu0 0.0
    %249 = vmatprep.subr.mxu0 0.0
    %250 = vmatpush1.msra.mxu0 0.0
    %251 = vmatprep.subr.mxu0 0.0
    %252 = vmatpush1.msra.mxu0 0.0
    %253 = vmatprep.subr.mxu0 0.0
    %254 = vmatpush1.msra.mxu0 0.0
    %255 = vmatprep.subr.mxu0 0.0
    %256 = vmatpush1.msra.mxu0 0.0
    %257 = vmatprep.subr.mxu0 0.0
    %258 = vmatpush1.msra.mxu0 0.0
    %259 = vmatprep.subr.mxu0 0.0
    %260 = vmatpush1.msra.mxu0 0.0
    %261 = vmatprep.subr.mxu0 0.0
    %262 = vmatpush1.msra.mxu0 0.0
    %263 = vmatprep.subr.mxu0 0.0
    %264 = vmatpush1.msra.mxu0 0.0
    %265 = vmatprep.subr.mxu0 0.0
    %266 = vmatpush1.msra.mxu0 0.0
    %267 = vmatprep.subr.mxu0 0.0
    %268 = vmatpush1.msra.mxu0 0.0
    %269 = vmatprep.subr.mxu0 0.0
    %270 = vmatpush1.msra.mxu0 0.0
    %271 = vmatprep.subr.mxu0 0.0
    %272 = vmatpush1.msra.mxu0 0.0
    %273 = vmatprep.mubr.f32.mxu0 0.0
    %274 = vmatmul.mubr.f32.gmra.mrb[0].mxu0 %v198
    %v275 = vpop.f32.mrb[0].mxu0
    %v276 = vadd.f32 %v179, %v275
    %v277 = vpop.f32.mrb[0].mxu0
    %278 = vmatprep.mubr.f32.mxu0 0.0
    %279 = vmatmul.mubr.f32.gmra.mrb[0].mxu0 %v201
    %v280 = vpop.f32.mrb[0].mxu0
    %v281 = vadd.f32 %v184, %v280
    %v282 = vpop.f32.mrb[0].mxu0
    %283 = vmatprep.mubr.f32.mxu0 0.0
    %284 = vmatmul.mubr.f32.gmra.mrb[0].mxu0 %v204
    %v285 = vpop.f32.mrb[0].mxu0
    %v286 = vadd.f32 %v189, %v285
    %v287 = vpop.f32.mrb[0].mxu0
    %288 = vmatprep.mubr.f32.mxu0 0.0
    %289 = vmatmul.mubr.f32.gmra.mrb[0].mxu0 %v207
    %v290 = vpop.f32.mrb[0].mxu0
    %v291 = vadd.f32 %v194, %v290
    %v292 = vpop.f32.mrb[0].mxu0
    %293 = vdwg.mxu0
    %v294 = vmul.f32 %v276, 0.5
    %v295 = vmul.f32 %v281, 0.5
    %v296 = vmul.f32 %v286, 0.5
    %v297 = vmul.f32 %v291, 0.5
    %v298 = vmul.f32 %v276, 0.70710677
    %v299 = vmul.f32 %v281, 0.70710677
    %v300 = vmul.f32 %v286, 0.70710677
    %v301 = vmul.f32 %v291, 0.70710677
    %v302 = verf.f32.pop %v298
    %v303 = verf.f32.pop %v299
    %v304 = verf.f32.pop %v300
    %v305 = verf.f32.pop %v301
    %v306 = vadd.f32 %v302, 1.0
    %v307 = vadd.f32 %v303, 1.0
    %v308 = vadd.f32 %v304, 1.0
    %v309 = vadd.f32 %v305, 1.0
    %v310 = vmul.f32 %v294, %v306
    %v311 = vmul.f32 %v295, %v307
    %v312 = vmul.f32 %v296, %v308
    %v313 = vmul.f32 %v297, %v309
    %s314 = scalar_lea.vmem %s3, 32
    %v315 = vld [vmem:[%s314] sm:$0xff]
    %v316 = vld [vmem:[%s314 + $0x8] sm:$0xff]
    %v317 = vld [vmem:[%s314 + $0x10] sm:$0xff]
    %v318 = vld [vmem:[%s314 + $0x18] sm:$0xff]
    %s319 = scalar_lea.vmem %s4, 32
    %v320 = vld [vmem:[%s319] sm:$0xff]
    %v321 = vld [vmem:[%s319 + $0x8] sm:$0xff]
    %v322 = vld [vmem:[%s319 + $0x10] sm:$0xff]
    %v323 = vld [vmem:[%s319 + $0x18] sm:$0xff]
    %325 = vset.pattern.permute.xlu0 0
    %326 = vperm.xlu0 %325, %v320
    %v327 = vpop.permute.xlu0 %326
    %330 = vset.pattern.permute.xlu0 0
    %331 = vperm.xlu0 %330, %v321
    %v332 = vpop.permute.xlu0 %331
    %335 = vset.pattern.permute.xlu0 0
    %336 = vperm.xlu0 %335, %v322
    %v337 = vpop.permute.xlu0 %336
    %340 = vset.pattern.permute.xlu0 0
    %341 = vperm.xlu0 %340, %v323
    %v342 = vpop.permute.xlu0 %341
    %v345 = vsel %vm196, %v315, 0
    %v348 = vsel %vm196, %v316, 0
    %v351 = vsel %vm196, %v317, 0
    %v354 = vsel %vm196, %v318, 0
    %356 = vmatprep.subr.mxu0 0.0
    %357 = vmatpush1.msra.mxu0 %v310
    %358 = vmatprep.subr.mxu0 0.0
    %359 = vmatpush1.msra.mxu0 %v311
    %360 = vmatprep.subr.mxu0 0.0
    %361 = vmatpush1.msra.mxu0 %v312
    %362 = vmatprep.subr.mxu0 0.0
    %363 = vmatpush1.msra.mxu0 %v313
    %364 = vmatprep.subr.mxu0 0.0
    %365 = vmatpush1.msra.mxu0 0.0
    %366 = vmatprep.subr.mxu0 0.0
    %367 = vmatpush1.msra.mxu0 0.0
    %368 = vmatprep.subr.mxu0 0.0
    %369 = vmatpush1.msra.mxu0 0.0
    %370 = vmatprep.subr.mxu0 0.0
    %371 = vmatpush1.msra.mxu0 0.0
    %372 = vmatprep.subr.mxu0 0.0
    %373 = vmatpush1.msra.mxu0 0.0
    %374 = vmatprep.subr.mxu0 0.0
    %375 = vmatpush1.msra.mxu0 0.0
    %376 = vmatprep.subr.mxu0 0.0
    %377 = vmatpush1.msra.mxu0 0.0
    %378 = vmatprep.subr.mxu0 0.0
    %379 = vmatpush1.msra.mxu0 0.0
    %380 = vmatprep.subr.mxu0 0.0
    %381 = vmatpush1.msra.mxu0 0.0
    %382 = vmatprep.subr.mxu0 0.0
    %383 = vmatpush1.msra.mxu0 0.0
    %384 = vmatprep.subr.mxu0 0.0
    %385 = vmatpush1.msra.mxu0 0.0
    %386 = vmatprep.subr.mxu0 0.0
    %387 = vmatpush1.msra.mxu0 0.0
    %388 = vmatprep.subr.mxu0 0.0
    %389 = vmatpush1.msra.mxu0 0.0
    %390 = vmatprep.subr.mxu0 0.0
    %391 = vmatpush1.msra.mxu0 0.0
    %392 = vmatprep.subr.mxu0 0.0
    %393 = vmatpush1.msra.mxu0 0.0
    %394 = vmatprep.subr.mxu0 0.0
    %395 = vmatpush1.msra.mxu0 0.0
    %396 = vmatprep.subr.mxu0 0.0
    %397 = vmatpush1.msra.mxu0 0.0
    %398 = vmatprep.subr.mxu0 0.0
    %399 = vmatpush1.msra.mxu0 0.0
    %400 = vmatprep.subr.mxu0 0.0
    %401 = vmatpush1.msra.mxu0 0.0
    %402 = vmatprep.subr.mxu0 0.0
    %403 = vmatpush1.msra.mxu0 0.0
    %404 = vmatprep.subr.mxu0 0.0
    %405 = vmatpush1.msra.mxu0 0.0
    %406 = vmatprep.subr.mxu0 0.0
    %407 = vmatpush1.msra.mxu0 0.0
    %408 = vmatprep.subr.mxu0 0.0
    %409 = vmatpush1.msra.mxu0 0.0
    %410 = vmatprep.subr.mxu0 0.0
    %411 = vmatpush1.msra.mxu0 0.0
    %412 = vmatprep.subr.mxu0 0.0
    %413 = vmatpush1.msra.mxu0 0.0
    %414 = vmatprep.subr.mxu0 0.0
    %415 = vmatpush1.msra.mxu0 0.0
    %416 = vmatprep.subr.mxu0 0.0
    %417 = vmatpush1.msra.mxu0 0.0
    %418 = vmatprep.subr.mxu0 0.0
    %419 = vmatpush1.msra.mxu0 0.0
    %420 = vmatprep.mubr.f32.mxu0 0.0
    %421 = vmatmul.mubr.f32.gmra.mrb[0].mxu0 %v345
    %v422 = vpop.f32.mrb[0].mxu0
    %v423 = vadd.f32 %v327, %v422
    %v424 = vpop.f32.mrb[0].mxu0
    %425 = vmatprep.mubr.f32.mxu0 0.0
    %426 = vmatmul.mubr.f32.gmra.mrb[0].mxu0 %v348
    %v427 = vpop.f32.mrb[0].mxu0
    %v428 = vadd.f32 %v332, %v427
    %v429 = vpop.f32.mrb[0].mxu0
    %430 = vmatprep.mubr.f32.mxu0 0.0
    %431 = vmatmul.mubr.f32.gmra.mrb[0].mxu0 %v351
    %v432 = vpop.f32.mrb[0].mxu0
    %v433 = vadd.f32 %v337, %v432
    %v434 = vpop.f32.mrb[0].mxu0
    %435 = vmatprep.mubr.f32.mxu0 0.0
    %436 = vmatmul.mubr.f32.gmra.mrb[0].mxu0 %v354
    %v437 = vpop.f32.mrb[0].mxu0
    %v438 = vadd.f32 %v342, %v437
    %v439 = vpop.f32.mrb[0].mxu0
    %440 = vdwg.mxu0
    %v441 = vmul.f32 %v423, 0.5
    %v442 = vmul.f32 %v428, 0.5
    %v443 = vmul.f32 %v433, 0.5
    %v444 = vmul.f32 %v438, 0.5
    %v445 = vmul.f32 %v423, 0.70710677
    %v446 = vmul.f32 %v428, 0.70710677
    %v447 = vmul.f32 %v433, 0.70710677
    %v448 = vmul.f32 %v438, 0.70710677
    %v449 = verf.f32.pop %v445
    %v450 = verf.f32.pop %v446
    %v451 = verf.f32.pop %v447
    %v452 = verf.f32.pop %v448
    %v453 = vadd.f32 %v449, 1.0
    %v454 = vadd.f32 %v450, 1.0
    %v455 = vadd.f32 %v451, 1.0
    %v456 = vadd.f32 %v452, 1.0
    %v457 = vmul.f32 %v441, %v453
    %v458 = vmul.f32 %v442, %v454
    %v459 = vmul.f32 %v443, %v455
    %v460 = vmul.f32 %v444, %v456
    %s461 = scalar_lea.vmem %s3, 64
    %v462 = vld [vmem:[%s461] sm:$0xff]
    %v463 = vld [vmem:[%s461 + $0x8] sm:$0xff]
    %v464 = vld [vmem:[%s461 + $0x10] sm:$0xff]
    %v465 = vld [vmem:[%s461 + $0x18] sm:$0xff]
    %s466 = scalar_lea.vmem %s4, 64
    %v467 = vld [vmem:[%s466] sm:$0xff]
    %v468 = vld [vmem:[%s466 + $0x8] sm:$0xff]
    %v469 = vld [vmem:[%s466 + $0x10] sm:$0xff]
    %v470 = vld [vmem:[%s466 + $0x18] sm:$0xff]
    %472 = vset.pattern.permute.xlu0 0
    %473 = vperm.xlu0 %472, %v467
    %v474 = vpop.permute.xlu0 %473
    %477 = vset.pattern.permute.xlu0 0
    %478 = vperm.xlu0 %477, %v468
    %v479 = vpop.permute.xlu0 %478
    %482 = vset.pattern.permute.xlu0 0
    %483 = vperm.xlu0 %482, %v469
    %v484 = vpop.permute.xlu0 %483
    %487 = vset.pattern.permute.xlu0 0
    %488 = vperm.xlu0 %487, %v470
    %v489 = vpop.permute.xlu0 %488
    %v492 = vsel %vm196, %v462, 0
    %v495 = vsel %vm196, %v463, 0
    %v498 = vsel %vm196, %v464, 0
    %v501 = vsel %vm196, %v465, 0
    %503 = vmatprep.subr.mxu0 0.0
    %504 = vmatpush1.msra.mxu0 %v457
    %505 = vmatprep.subr.mxu0 0.0
    %506 = vmatpush1.msra.mxu0 %v458
    %507 = vmatprep.subr.mxu0 0.0
    %508 = vmatpush1.msra.mxu0 %v459
    %509 = vmatprep.subr.mxu0 0.0
    %510 = vmatpush1.msra.mxu0 %v460
    %511 = vmatprep.subr.mxu0 0.0
    %512 = vmatpush1.msra.mxu0 0.0
    %513 = vmatprep.subr.mxu0 0.0
    %514 = vmatpush1.msra.mxu0 0.0
    %515 = vmatprep.subr.mxu0 0.0
    %516 = vmatpush1.msra.mxu0 0.0
    %517 = vmatprep.subr.mxu0 0.0
    %518 = vmatpush1.msra.mxu0 0.0
    %519 = vmatprep.subr.mxu0 0.0
    %520 = vmatpush1.msra.mxu0 0.0
    %521 = vmatprep.subr.mxu0 0.0
    %522 = vmatpush1.msra.mxu0 0.0
    %523 = vmatprep.subr.mxu0 0.0
    %524 = vmatpush1.msra.mxu0 0.0
    %525 = vmatprep.subr.mxu0 0.0
    %526 = vmatpush1.msra.mxu0 0.0
    %527 = vmatprep.subr.mxu0 0.0
    %528 = vmatpush1.msra.mxu0 0.0
    %529 = vmatprep.subr.mxu0 0.0
    %530 = vmatpush1.msra.mxu0 0.0
    %531 = vmatprep.subr.mxu0 0.0
    %532 = vmatpush1.msra.mxu0 0.0
    %533 = vmatprep.subr.mxu0 0.0
    %534 = vmatpush1.msra.mxu0 0.0
    %535 = vmatprep.subr.mxu0 0.0
    %536 = vmatpush1.msra.mxu0 0.0
    %537 = vmatprep.subr.mxu0 0.0
    %538 = vmatpush1.msra.mxu0 0.0
    %539 = vmatprep.subr.mxu0 0.0
    %540 = vmatpush1.msra.mxu0 0.0
    %541 = vmatprep.subr.mxu0 0.0
    %542 = vmatpush1.msra.mxu0 0.0
    %543 = vmatprep.subr.mxu0 0.0
    %544 = vmatpush1.msra.mxu0 0.0
    %545 = vmatprep.subr.mxu0 0.0
    %546 = vmatpush1.msra.mxu0 0.0
    %547 = vmatprep.subr.mxu0 0.0
    %548 = vmatpush1.msra.mxu0 0.0
    %549 = vmatprep.subr.mxu0 0.0
    %550 = vmatpush1.msra.mxu0 0.0
    %551 = vmatprep.subr.mxu0 0.0
    %552 = vmatpush1.msra.mxu0 0.0
    %553 = vmatprep.subr.mxu0 0.0
    %554 = vmatpush1.msra.mxu0 0.0
    %555 = vmatprep.subr.mxu0 0.0
    %556 = vmatpush1.msra.mxu0 0.0
    %557 = vmatprep.subr.mxu0 0.0
    %558 = vmatpush1.msra.mxu0 0.0
    %559 = vmatprep.subr.mxu0 0.0
    %560 = vmatpush1.msra.mxu0 0.0
    %561 = vmatprep.subr.mxu0 0.0
    %562 = vmatpush1.msra.mxu0 0.0
    %563 = vmatprep.subr.mxu0 0.0
    %564 = vmatpush1.msra.mxu0 0.0
    %565 = vmatprep.subr.mxu0 0.0
    %566 = vmatpush1.msra.mxu0 0.0
    %567 = vmatprep.mubr.f32.mxu0 0.0
    %568 = vmatmul.mubr.f32.gmra.mrb[0].mxu0 %v492
    %v569 = vpop.f32.mrb[0].mxu0
    %v570 = vadd.f32 %v474, %v569
    %v571 = vpop.f32.mrb[0].mxu0
    %572 = vmatprep.mubr.f32.mxu0 0.0
    %573 = vmatmul.mubr.f32.gmra.mrb[0].mxu0 %v495
    %v574 = vpop.f32.mrb[0].mxu0
    %v575 = vadd.f32 %v479, %v574
    %v576 = vpop.f32.mrb[0].mxu0
    %577 = vmatprep.mubr.f32.mxu0 0.0
    %578 = vmatmul.mubr.f32.gmra.mrb[0].mxu0 %v498
    %v579 = vpop.f32.mrb[0].mxu0
    %v580 = vadd.f32 %v484, %v579
    %v581 = vpop.f32.mrb[0].mxu0
    %582 = vmatprep.mubr.f32.mxu0 0.0
    %583 = vmatmul.mubr.f32.gmra.mrb[0].mxu0 %v501
    %v584 = vpop.f32.mrb[0].mxu0
    %v585 = vadd.f32 %v489, %v584
    %v586 = vpop.f32.mrb[0].mxu0
    %587 = vdwg.mxu0
    %v588 = vmul.f32 %v570, 0.5
    %v589 = vmul.f32 %v575, 0.5
    %v590 = vmul.f32 %v580, 0.5
    %v591 = vmul.f32 %v585, 0.5
    %v592 = vmul.f32 %v570, 0.70710677
    %v593 = vmul.f32 %v575, 0.70710677
    %v594 = vmul.f32 %v580, 0.70710677
    %v595 = vmul.f32 %v585, 0.70710677
    %v596 = verf.f32.pop %v592
    %v597 = verf.f32.pop %v593
    %v598 = verf.f32.pop %v594
    %v599 = verf.f32.pop %v595
    %v600 = vadd.f32 %v596, 1.0
    %v601 = vadd.f32 %v597, 1.0
    %v602 = vadd.f32 %v598, 1.0
    %v603 = vadd.f32 %v599, 1.0
    %v604 = vmul.f32 %v588, %v600
    %v605 = vmul.f32 %v589, %v601
    %v606 = vmul.f32 %v590, %v602
    %v607 = vmul.f32 %v591, %v603
    %s608 = scalar_lea.vmem %s3, 96
    %v609 = vld [vmem:[%s608] sm:$0xff]
    %v610 = vld [vmem:[%s608 + $0x8] sm:$0xff]
    %v611 = vld [vmem:[%s608 + $0x10] sm:$0xff]
    %v612 = vld [vmem:[%s608 + $0x18] sm:$0xff]
    %s613 = scalar_lea.vmem %s4, 96
    %v614 = vld [vmem:[%s613] sm:$0xff]
    %v615 = vld [vmem:[%s613 + $0x8] sm:$0xff]
    %v616 = vld [vmem:[%s613 + $0x10] sm:$0xff]
    %v617 = vld [vmem:[%s613 + $0x18] sm:$0xff]
    %619 = vset.pattern.permute.xlu0 0
    %620 = vperm.xlu0 %619, %v614
    %v621 = vpop.permute.xlu0 %620
    %624 = vset.pattern.permute.xlu0 0
    %625 = vperm.xlu0 %624, %v615
    %v626 = vpop.permute.xlu0 %625
    %629 = vset.pattern.permute.xlu0 0
    %630 = vperm.xlu0 %629, %v616
    %v631 = vpop.permute.xlu0 %630
    %634 = vset.pattern.permute.xlu0 0
    %635 = vperm.xlu0 %634, %v617
    %v636 = vpop.permute.xlu0 %635
    %v639 = vsel %vm196, %v609, 0
    %v642 = vsel %vm196, %v610, 0
    %v645 = vsel %vm196, %v611, 0
    %v648 = vsel %vm196, %v612, 0
    %650 = vmatprep.subr.mxu0 0.0
    %651 = vmatpush1.msra.mxu0 %v604
    %652 = vmatprep.subr.mxu0 0.0
    %653 = vmatpush1.msra.mxu0 %v605
    %654 = vmatprep.subr.mxu0 0.0
    %655 = vmatpush1.msra.mxu0 %v606
    %656 = vmatprep.subr.mxu0 0.0
    %657 = vmatpush1.msra.mxu0 %v607
    %658 = vmatprep.subr.mxu0 0.0
    %659 = vmatpush1.msra.mxu0 0.0
    %660 = vmatprep.subr.mxu0 0.0
    %661 = vmatpush1.msra.mxu0 0.0
    %662 = vmatprep.subr.mxu0 0.0
    %663 = vmatpush1.msra.mxu0 0.0
    %664 = vmatprep.subr.mxu0 0.0
    %665 = vmatpush1.msra.mxu0 0.0
    %666 = vmatprep.subr.mxu0 0.0
    %667 = vmatpush1.msra.mxu0 0.0
    %668 = vmatprep.subr.mxu0 0.0
    %669 = vmatpush1.msra.mxu0 0.0
    %670 = vmatprep.subr.mxu0 0.0
    %671 = vmatpush1.msra.mxu0 0.0
    %672 = vmatprep.subr.mxu0 0.0
    %673 = vmatpush1.msra.mxu0 0.0
    %674 = vmatprep.subr.mxu0 0.0
    %675 = vmatpush1.msra.mxu0 0.0
    %676 = vmatprep.subr.mxu0 0.0
    %677 = vmatpush1.msra.mxu0 0.0
    %678 = vmatprep.subr.mxu0 0.0
    %679 = vmatpush1.msra.mxu0 0.0
    %680 = vmatprep.subr.mxu0 0.0
    %681 = vmatpush1.msra.mxu0 0.0
    %682 = vmatprep.subr.mxu0 0.0
    %683 = vmatpush1.msra.mxu0 0.0
    %684 = vmatprep.subr.mxu0 0.0
    %685 = vmatpush1.msra.mxu0 0.0
    %686 = vmatprep.subr.mxu0 0.0
    %687 = vmatpush1.msra.mxu0 0.0
    %688 = vmatprep.subr.mxu0 0.0
    %689 = vmatpush1.msra.mxu0 0.0
    %690 = vmatprep.subr.mxu0 0.0
    %691 = vmatpush1.msra.mxu0 0.0
    %692 = vmatprep.subr.mxu0 0.0
    %693 = vmatpush1.msra.mxu0 0.0
    %694 = vmatprep.subr.mxu0 0.0
    %695 = vmatpush1.msra.mxu0 0.0
    %696 = vmatprep.subr.mxu0 0.0
    %697 = vmatpush1.msra.mxu0 0.0
    %698 = vmatprep.subr.mxu0 0.0
    %699 = vmatpush1.msra.mxu0 0.0
    %700 = vmatprep.subr.mxu0 0.0
    %701 = vmatpush1.msra.mxu0 0.0
    %702 = vmatprep.subr.mxu0 0.0
    %703 = vmatpush1.msra.mxu0 0.0
    %704 = vmatprep.subr.mxu0 0.0
    %705 = vmatpush1.msra.mxu0 0.0
    %706 = vmatprep.subr.mxu0 0.0
    %707 = vmatpush1.msra.mxu0 0.0
    %708 = vmatprep.subr.mxu0 0.0
    %709 = vmatpush1.msra.mxu0 0.0
    %710 = vmatprep.subr.mxu0 0.0
    %711 = vmatpush1.msra.mxu0 0.0
    %712 = vmatprep.subr.mxu0 0.0
    %713 = vmatpush1.msra.mxu0 0.0
    %714 = vmatprep.mubr.f32.mxu0 0.0
    %715 = vmatmul.mubr.f32.gmra.mrb[0].mxu0 %v639
    %v716 = vpop.f32.mrb[0].mxu0
    %v717 = vadd.f32 %v621, %v716
    %v718 = vpop.f32.mrb[0].mxu0
    %719 = vmatprep.mubr.f32.mxu0 0.0
    %720 = vmatmul.mubr.f32.gmra.mrb[0].mxu0 %v642
    %v721 = vpop.f32.mrb[0].mxu0
    %v722 = vadd.f32 %v626, %v721
    %v723 = vpop.f32.mrb[0].mxu0
    %724 = vmatprep.mubr.f32.mxu0 0.0
    %725 = vmatmul.mubr.f32.gmra.mrb[0].mxu0 %v645
    %v726 = vpop.f32.mrb[0].mxu0
    %v727 = vadd.f32 %v631, %v726
    %v728 = vpop.f32.mrb[0].mxu0
    %729 = vmatprep.mubr.f32.mxu0 0.0
    %730 = vmatmul.mubr.f32.gmra.mrb[0].mxu0 %v648
    %v731 = vpop.f32.mrb[0].mxu0
    %v732 = vadd.f32 %v636, %v731
    %v733 = vpop.f32.mrb[0].mxu0
    %734 = vdwg.mxu0
    %v735 = vtanh.pop %v717
    %v736 = vtanh.pop %v722
    %v737 = vtanh.pop %v727
    %v738 = vtanh.pop %v732
    %739 = vst [vmem:[#allocation2] sm:$0xff] %v735
    %740 = vst [vmem:[#allocation2 + $0x8] sm:$0xff] %v736
    %741 = vst [vmem:[#allocation2 + $0x10] sm:$0xff] %v737
    %742 = vst [vmem:[#allocation2 + $0x18] sm:$0xff] %v738
    // Predicated region
    $region22: #{tpu_custom_call.1} parent=1 // pred_check
      _
    $region23: #{tpu_custom_call.1} parent=1 // pred_check_branch
      %744 = sbr.rel (0) target = $region25
    $region24: #{tpu_custom_call.1} parent=1 // pred_region
      %s746 = ssub.s32 512, 512
      %747 = vsyncadd [#allocation3], %s746
      %s748 = sshll.u32 [#allocation2], 4
      %s749 = int_to_ptr.vmem [resolvable:$true] %s748
      %754 = dma.vmem_to_hbm [thread:$0]  %s749, 512, %s5, [#allocation3], 128, 128, 8
    $region25: #{tpu_custom_call.1} parent=1 // pred_fallthru
      _
    // Predicated region
    $region26: #{tpu_custom_call.1} parent=1 // pred_check
      _
    $region27: #{tpu_custom_call.1} parent=1 // pred_check_branch
      %756 = sbr.rel (0) target = $region29
    $region28: #{tpu_custom_call.1} parent=1 // pred_region
      %757 = dma.done [#allocation3], 512
    $region29: #{tpu_custom_call.1} parent=1 // pred_fallthru
      _
    %758 = vsyncpa [#allocation3], 1

</llo_original>
